<compile_context>
chip_gen: v7x
topology: tpu7x:2x2x1
jax: 0.10.0
libtpu: 0.0.40
codegen_flags: <defaults>
</compile_context>

<pallas_src>
import functools

import jax
import jax.numpy as jnp
from jax.experimental import pallas as pl
from jax.experimental.pallas import tpu as pltpu


def _round_up(x, m):
    return (x + m - 1) // m * m


# ----------------------------- Pallas kernels -----------------------------

def _matmul_kernel(x_ref, w_ref, o_ref, acc_ref, *, apply_lrelu):
    """Tiled matmul with f32 accumulator. x:[tm,tk] bf16, w:[tk,tn] bf16."""
    @pl.when(pl.program_id(2) == 0)
    def _():
        acc_ref[...] = jnp.zeros_like(acc_ref)

    acc_ref[...] += jnp.dot(x_ref[...], w_ref[...],
                            preferred_element_type=jnp.float32)

    @pl.when(pl.program_id(2) == pl.num_programs(2) - 1)
    def _():
        acc = acc_ref[...]
        if apply_lrelu:
            acc = jnp.where(acc > 0, acc, 0.2 * acc)
        o_ref[...] = acc.astype(o_ref.dtype)


def _instnorm_lrelu_kernel(x_ref, o_ref, *, eps):
    """Each row is one (n, c) instance flattened over H*W.
    Matches nn.InstanceNorm2d defaults: affine=False, eps=1e-5, biased var."""
    x = x_ref[...]
    mean = jnp.mean(x, axis=1, keepdims=True)
    var = jnp.mean(jnp.square(x - mean), axis=1, keepdims=True)
    y = (x - mean) * jax.lax.rsqrt(var + eps)
    o_ref[...] = jnp.where(y > 0, y, 0.2 * y)


# ----------------------------- Pallas wrappers -----------------------------

def pallas_conv_matmul(patches, wmat, *, apply_lrelu, out_dtype=jnp.float32):
    """patches: [M, K] bf16, wmat: [K, Cout] bf16 -> [M, Cout] f32."""
    M, K = patches.shape
    Kw, Cout = wmat.shape
    assert K == Kw

    # Tile sizes. tn stays at 128 (v5e MXU width); K uses a single full-dim
    # block when small enough (no padding of the big patch matrix).
    tm = min(256, _round_up(M, 8))
    tk = K if K <= 2048 else 512
    tn = Cout if Cout <= 128 else 128

    Mp = _round_up(M, tm)
    Kp = _round_up(K, tk)
    Np = _round_up(Cout, tn)

    xp = patches if (Mp, Kp) == (M, K) else jnp.pad(
        patches, ((0, Mp - M), (0, Kp - K)))
    wp = wmat if (Kp, Np) == (K, Cout) else jnp.pad(
        wmat, ((0, Kp - K), (0, Np - Cout)))

    grid = (Mp // tm, Np // tn, Kp // tk)
    kernel = functools.partial(_matmul_kernel, apply_lrelu=apply_lrelu)

    out = pl.pallas_call(
        kernel,
        out_shape=jax.ShapeDtypeStruct((Mp, Np), out_dtype),
        grid=grid,
        in_specs=[
            pl.BlockSpec((tm, tk), lambda i, j, k: (i, k)),
            pl.BlockSpec((tk, tn), lambda i, j, k: (k, j)),
        ],
        out_specs=pl.BlockSpec((tm, tn), lambda i, j, k: (i, j)),
        scratch_shapes=[pltpu.VMEM((tm, tn), jnp.float32)],
        compiler_params=pltpu.CompilerParams(
            dimension_semantics=("parallel", "parallel", "arbitrary")),
        cost_estimate=pl.CostEstimate(
            flops=2 * Mp * Kp * Np,
            transcendentals=0,
            bytes_accessed=Mp * Kp * patches.dtype.itemsize
                          + Kp * Np * wmat.dtype.itemsize
                          + Mp * Np * jnp.dtype(out_dtype).itemsize),
    )(xp, wp)

    if (Mp, Np) != (M, Cout):
        out = out[:M, :Cout]
    return out


def pallas_instnorm_lrelu_rows(x2d, eps=1e-5):
    """x2d: [N*C, H*W] f32 -> InstanceNorm (no affine) + LeakyReLU(0.2), row-tiled."""
    R, L = x2d.shape
    # Row tile: multiple of 8, cap per-block VMEM at ~4 MiB so double-buffering
    # fits comfortably even on v7x's 64 MiB VMEM.
    max_rows_by_vmem = max(8, ((4 << 20) // max(L * 4, 1)) // 8 * 8)
    tr = min(256, max_rows_by_vmem, _round_up(R, 8))
    Rp = _round_up(R, tr)
    xp = x2d if Rp == R else jnp.pad(x2d, ((0, Rp - R), (0, 0)))

    out = pl.pallas_call(
        functools.partial(_instnorm_lrelu_kernel, eps=eps),
        out_shape=jax.ShapeDtypeStruct((Rp, L), jnp.float32),
        grid=(Rp // tr,),
        in_specs=[pl.BlockSpec((tr, L), lambda i: (i, 0))],
        out_specs=pl.BlockSpec((tr, L), lambda i: (i, 0)),
        compiler_params=pltpu.CompilerParams(dimension_semantics=("parallel",)),
        cost_estimate=pl.CostEstimate(
            flops=7 * Rp * L, transcendentals=Rp, bytes_accessed=2 * Rp * L * 4),
    )(xp)
    return out if Rp == R else out[:R]


# ----------------------------- conv glue (im2col, NHWC) -----------------------------

def _im2col_nhwc(x_nhwc, k, stride, pad):
    """Extract kxk patches from NHWC input. Returns [N*Ho*Wo, k*k*C]
    (feature index = (i*k + j)*C + c), plus Ho, Wo."""
    xp = jnp.pad(x_nhwc, ((0, 0), (pad, pad), (pad, pad), (0, 0)))
    N, H, W, C = xp.shape
    Ho = (H - k) // stride + 1
    Wo = (W - k) // stride + 1
    cols = []
    for i in range(k):
        for j in range(k):
            cols.append(xp[:, i:i + stride * Ho:stride, j:j + stride * Wo:stride, :])
    p = jnp.stack(cols, axis=3)                       # [N, Ho, Wo, k*k, C]
    p = p.reshape(N * Ho * Wo, k * k * C)
    return p, Ho, Wo


# ----------------------------- UNetDown forward -----------------------------

def unet_down_forward(w, x_nchw, *, normalize=True, dropout=0.0):
    """w: [Cout, Cin, 4, 4] (bias=False), x: NCHW. Returns NCHW output."""
    Cout, Cin, kh, kw = w.shape
    N, C, H, W = x_nchw.shape
    assert C == Cin and kh == 4 and kw == 4

    # One NCHW -> NHWC layout change so channels are lane-dense for the matmul.
    x_nhwc = jnp.transpose(x_nchw, (0, 2, 3, 1))
    patches, Ho, Wo = _im2col_nhwc(x_nhwc, k=4, stride=2, pad=1)

    # [Cout, Cin, kh, kw] -> [kh*kw*Cin, Cout], matching the patch feature order.
    wmat = jnp.transpose(w, (2, 3, 1, 0)).reshape(kh * kw * Cin, Cout)

    # bf16 MXU inputs, f32 accumulation. LeakyReLU fused into the matmul epilogue
    # only when there is no InstanceNorm (otherwise it is fused into the IN kernel).
    y = pallas_conv_matmul(patches.astype(jnp.bfloat16),
                           wmat.astype(jnp.bfloat16),
                           apply_lrelu=not normalize)          # [M, Cout] f32

    if normalize:
        # [N*Ho*Wo, Cout] -> (N*Cout, Ho*Wo) rows for the fused IN + LeakyReLU kernel,
        # which then reshapes straight into the NCHW output (no extra transpose).
        y = y.reshape(N, Ho * Wo, Cout).transpose(0, 2, 1).reshape(N * Cout, Ho * Wo)
        y = pallas_instnorm_lrelu_rows(y)
        y = y.reshape(N, Cout, Ho, Wo)
    else:
        y = y.reshape(N, Ho, Wo, Cout).transpose(0, 3, 1, 2)

    # dropout=0.0 (module default) is the identity.
    # TODO(synk): training-mode Dropout (Bernoulli mask + 1/(1-p) scale) for dropout>0.
    return y


# ----------------------------- reference & test -----------------------------

def _reference_unet_down(w, x_nchw, normalize=True):
    y = jax.lax.conv_general_dilated(
        x_nchw, w, window_strides=(2, 2), padding=((1, 1), (1, 1)),
        dimension_numbers=("NCHW", "OIHW", "NCHW"))
    if normalize:
        mean = jnp.mean(y, axis=(2, 3), keepdims=True)
        var = jnp.mean(jnp.square(y - mean), axis=(2, 3), keepdims=True)
        y = (y - mean) * jax.lax.rsqrt(var + 1e-5)
    return jnp.where(y > 0, y, 0.2 * y)


if __name__ == "__main__":
    key = jax.random.PRNGKey(0)
    kw_, kx = jax.random.split(key)

    batch, in_channels, out_channels, hw = 2, 4, 64, 16
    w = 0.02 * jax.random.normal(kw_, (out_channels, in_channels, 4, 4), jnp.float32)
    x = jax.random.normal(kx, (batch, in_channels, hw, hw), jnp.float32)

    fwd = jax.jit(functools.partial(unet_down_forward, normalize=True, dropout=0.0))
    out = fwd(w, x)
    jax.block_until_ready(out)

    assert out.shape == (batch, out_channels, hw // 2, hw // 2), out.shape
    assert bool(jnp.all(jnp.isfinite(out)))

    # Cross-check vs plain-JAX f32 reference (bf16 MXU inputs -> small tolerance).
    ref = _reference_unet_down(w, x, normalize=True)
    max_err = float(jnp.max(jnp.abs(out - ref)))
    assert max_err < 0.15, f"max abs error {max_err}"

    print("KERNEL_OK")
</pallas_src>

<mosaic_0001>
module attributes {stable_mosaic.version = 11 : i64} {
  func.func @_instnorm_lrelu_kernel(%arg0: i32, %arg1: memref<128x64xf32, #tpu.memory_space<vmem>>, %arg2: memref<128x64xf32, #tpu.memory_space<vmem>>) attributes {dimension_semantics = [#tpu.dimension_semantics<parallel>], iteration_bounds = array<i64: 1>, scalar_prefetch = 0 : i64, scratch_operands = 0 : i64, tpu.core_type = #tpu.core_type<tc>, window_params = [{transform_indices = @transform_0, window_bounds = array<i64: 128, 64>}, {transform_indices = @transform_1, window_bounds = array<i64: 128, 64>}]} {
    %c0 = arith.constant 0 : index
    %c0_0 = arith.constant 0 : index
    %0 = vector.load %arg1[%c0, %c0_0] : memref<128x64xf32, #tpu.memory_space<vmem>>, vector<128x64xf32>
    %cst = arith.constant dense<0.000000e+00> : vector<128xf32>
    %1 = vector.multi_reduction <add>, %0, %cst [1] : vector<128x64xf32> to vector<128xf32>
    %2 = vector.shape_cast %1 : vector<128xf32> to vector<128x1xf32>
    %cst_1 = arith.constant 6.400000e+01 : f32
    %3 = vector.broadcast %cst_1 : f32 to vector<128x1xf32>
    %4 = arith.divf %2, %3 : vector<128x1xf32>
    %5 = vector.broadcast %4 : vector<128x1xf32> to vector<128x64xf32>
    %6 = arith.subf %0, %5 : vector<128x64xf32>
    %7 = arith.mulf %6, %6 : vector<128x64xf32>
    %cst_2 = arith.constant dense<0.000000e+00> : vector<128xf32>
    %8 = vector.multi_reduction <add>, %7, %cst_2 [1] : vector<128x64xf32> to vector<128xf32>
    %9 = vector.shape_cast %8 : vector<128xf32> to vector<128x1xf32>
    %cst_3 = arith.constant 6.400000e+01 : f32
    %10 = vector.broadcast %cst_3 : f32 to vector<128x1xf32>
    %11 = arith.divf %9, %10 : vector<128x1xf32>
    %12 = vector.broadcast %4 : vector<128x1xf32> to vector<128x64xf32>
    %13 = arith.subf %0, %12 : vector<128x64xf32>
    %cst_4 = arith.constant 9.99999974E-6 : f32
    %14 = vector.broadcast %cst_4 : f32 to vector<128x1xf32>
    %15 = arith.addf %11, %14 : vector<128x1xf32>
    %16 = math.rsqrt %15 : vector<128x1xf32>
    %17 = vector.broadcast %16 : vector<128x1xf32> to vector<128x64xf32>
    %18 = arith.mulf %13, %17 : vector<128x64xf32>
    %cst_5 = arith.constant 0.000000e+00 : f32
    %19 = vector.broadcast %cst_5 : f32 to vector<128x64xf32>
    %20 = arith.cmpf ogt, %18, %19 : vector<128x64xf32>
    %cst_6 = arith.constant 2.000000e-01 : f32
    %21 = vector.broadcast %cst_6 : f32 to vector<128x64xf32>
    %22 = arith.mulf %21, %18 : vector<128x64xf32>
    %23 = arith.select %20, %18, %22 : vector<128x64xi1>, vector<128x64xf32>
    %c0_7 = arith.constant 0 : index
    %c0_8 = arith.constant 0 : index
    %24 = vector.load %arg2[%c0_7, %c0_8] : memref<128x64xf32, #tpu.memory_space<vmem>>, vector<128x64xf32>
    tpu.vector_store %arg2[%c0_7, %c0_8], %23 {strides = array<i32>} : memref<128x64xf32, #tpu.memory_space<vmem>>, vector<128x64xf32>,
    return
  }
  func.func @transform_0(%arg0: i32) -> (i32, i32) {
    %c0_i32 = arith.constant 0 : i32
    %c0_i32_0 = arith.constant 0 : i32
    return %arg0, %c0_i32 : i32, i32
  }
  func.func @transform_1(%arg0: i32) -> (i32, i32) {
    %c0_i32 = arith.constant 0 : i32
    %c0_i32_0 = arith.constant 0 : i32
    return %arg0, %c0_i32 : i32, i32
  }
}

module attributes {stable_mosaic.version = 11 : i64} {
  func.func @_matmul_kernel(%arg0: i32, %arg1: i32, %arg2: i32, %arg3: memref<128x64xbf16, #tpu.memory_space<vmem>>, %arg4: memref<64x64xbf16, #tpu.memory_space<vmem>>, %arg5: memref<128x64xf32, #tpu.memory_space<vmem>>, %arg6: memref<128x64xf32, #tpu.memory_space<vmem>>) attributes {dimension_semantics = [#tpu.dimension_semantics<parallel>, #tpu.dimension_semantics<parallel>, #tpu.dimension_semantics<arbitrary>], iteration_bounds = array<i64: 1, 1, 1>, scalar_prefetch = 0 : i64, scratch_operands = 1 : i64, tpu.core_type = #tpu.core_type<tc>, window_params = [{transform_indices = @transform_0, window_bounds = array<i64: 128, 64>}, {transform_indices = @transform_1, window_bounds = array<i64: 64, 64>}, {transform_indices = @transform_2, window_bounds = array<i64: 128, 64>}]} {
    %c0_i32 = arith.constant 0 : i32
    %0 = arith.cmpi eq, %arg2, %c0_i32 : i32
    %1 = arith.extui %0 : i1 to i32
    %c0_i32_0 = arith.constant 0 : i32
    %2 = arith.cmpi ne, %1, %c0_i32_0 : i32
    scf.if %2 {
      %cst_10 = arith.constant 0.000000e+00 : f32
      %12 = vector.broadcast %cst_10 : f32 to vector<128x64xf32>
      %c0_11 = arith.constant 0 : index
      %c0_12 = arith.constant 0 : index
      %13 = vector.load %arg6[%c0_11, %c0_12] : memref<128x64xf32, #tpu.memory_space<vmem>>, vector<128x64xf32>
      tpu.vector_store %arg6[%c0_11, %c0_12], %12 {strides = array<i32>} : memref<128x64xf32, #tpu.memory_space<vmem>>, vector<128x64xf32>,
    } else {
    }
    %c0 = arith.constant 0 : index
    %c0_1 = arith.constant 0 : index
    %3 = vector.load %arg6[%c0, %c0_1] : memref<128x64xf32, #tpu.memory_space<vmem>>, vector<128x64xf32>
    %c0_2 = arith.constant 0 : index
    %c0_3 = arith.constant 0 : index
    %4 = vector.load %arg3[%c0_2, %c0_3] : memref<128x64xbf16, #tpu.memory_space<vmem>>, vector<128x64xbf16>
    %c0_4 = arith.constant 0 : index
    %c0_5 = arith.constant 0 : index
    %5 = vector.load %arg4[%c0_4, %c0_5] : memref<64x64xbf16, #tpu.memory_space<vmem>>, vector<64x64xbf16>
    %cst = arith.constant dense<0.000000e+00> : vector<128x64xf32>
    %6 = tpu.matmul %4, %5, %cst {dimension_numbers = #tpu.dot_dimension_numbers<[1], [0], [0], [1], [0, 0, 1, 1], [], []>} : vector<128x64xbf16>, vector<64x64xbf16>, vector<128x64xf32> -> vector<128x64xf32>
    %7 = arith.addf %3, %6 : vector<128x64xf32>
    %c0_6 = arith.constant 0 : index
    %c0_7 = arith.constant 0 : index
    %8 = vector.load %arg6[%c0_6, %c0_7] : memref<128x64xf32, #tpu.memory_space<vmem>>, vector<128x64xf32>
    tpu.vector_store %arg6[%c0_6, %c0_7], %7 {strides = array<i32>} : memref<128x64xf32, #tpu.memory_space<vmem>>, vector<128x64xf32>,
    %c0_i32_8 = arith.constant 0 : i32
    %9 = arith.cmpi eq, %arg2, %c0_i32_8 : i32
    %10 = arith.extui %9 : i1 to i32
    %c0_i32_9 = arith.constant 0 : i32
    %11 = arith.cmpi ne, %10, %c0_i32_9 : i32
    scf.if %11 {
      %c0_10 = arith.constant 0 : index
      %c0_11 = arith.constant 0 : index
      %12 = vector.load %arg6[%c0_10, %c0_11] : memref<128x64xf32, #tpu.memory_space<vmem>>, vector<128x64xf32>
      %c0_12 = arith.constant 0 : index
      %c0_13 = arith.constant 0 : index
      %13 = vector.load %arg5[%c0_12, %c0_13] : memref<128x64xf32, #tpu.memory_space<vmem>>, vector<128x64xf32>
      tpu.vector_store %arg5[%c0_12, %c0_13], %12 {strides = array<i32>} : memref<128x64xf32, #tpu.memory_space<vmem>>, vector<128x64xf32>,
    } else {
    }
    return
  }
  func.func @transform_0(%arg0: i32, %arg1: i32, %arg2: i32) -> (i32, i32) {
    %c0_i32 = arith.constant 0 : i32
    return %arg0, %arg2 : i32, i32
  }
  func.func @transform_1(%arg0: i32, %arg1: i32, %arg2: i32) -> (i32, i32) {
    %c0_i32 = arith.constant 0 : i32
    return %arg2, %arg1 : i32, i32
  }
  func.func @transform_2(%arg0: i32, %arg1: i32, %arg2: i32) -> (i32, i32) {
    %c0_i32 = arith.constant 0 : i32
    return %arg0, %arg1 : i32, i32
  }
}

</mosaic_0001>

<llo_original>
// kernel: unet_down_forward.3
$region0: #{unet_down_forward.3}
  #allocation0 [shape = 'u32[]', space=smem, size = 0x4, offset = 0x4, fixed_abs, tag = 'smem constant byte address 0x4 - core index']
  #allocation1 [shape = 'u32[144,128]{1,0:T(1,128)}', space=vmem, size = 0x12000, scoped, tag = 'internal scratch']
  %s0 = inlined_call_operand.vmem [shape: f32[128,64], index: 0, kind: input, shape index: {}]
  %s1 = inlined_call_operand.vmem [shape: f32[128,64], index: 1, kind: output, shape index: {}]
  %s2 = sld [smem:[#allocation0]]
  $region14: #{unet_down_forward.3} parent=0
    _
  %s4 = ssub.s32 1, %s2
  %s5 = scalar_select 0, %s4, %s2
  // Predicated region
  $region2: #{unet_down_forward.3} parent=0 // pred_check
    _
  $region3: #{unet_down_forward.3} parent=0 // pred_check_branch
    %7 = sbr.rel (0) target = $region5
  $region4: #{unet_down_forward.3} parent=0 // pred_region
    _
  $region5: #{unet_down_forward.3} parent=0 // pred_fallthru
    _
  %v8 = vld [vmem:[%s0] sm:$0xff]
  %v9 = vld [vmem:[%s0 + $0x8] sm:$0xff]
  %v10 = vld [vmem:[%s0 + $0x10] sm:$0xff]
  %v11 = vld [vmem:[%s0 + $0x18] sm:$0xff]
  %v12 = vld [vmem:[%s0 + $0x20] sm:$0xff]
  %v13 = vld [vmem:[%s0 + $0x28] sm:$0xff]
  %v14 = vld [vmem:[%s0 + $0x30] sm:$0xff]
  %v15 = vld [vmem:[%s0 + $0x38] sm:$0xff]
  %v16 = vld [vmem:[%s0 + $0x40] sm:$0xff]
  %v17 = vld [vmem:[%s0 + $0x48] sm:$0xff]
  %v18 = vld [vmem:[%s0 + $0x50] sm:$0xff]
  %v19 = vld [vmem:[%s0 + $0x58] sm:$0xff]
  %v20 = vld [vmem:[%s0 + $0x60] sm:$0xff]
  %v21 = vld [vmem:[%s0 + $0x68] sm:$0xff]
  %v22 = vld [vmem:[%s0 + $0x70] sm:$0xff]
  %v23 = vld [vmem:[%s0 + $0x78] sm:$0xff]
  %vm24 = vcmask 523264
  %v25 = vsel %vm24, %v8, 0.0
  %26 = vadd.xlane.f32.xlu0 %v25
  %v27 = vpop.xlane.xlu0 %26
  %v28 = vsel %vm24, %v9, 0.0
  %29 = vadd.xlane.f32.xlu0 %v28
  %v30 = vpop.xlane.xlu0 %29
  %v31 = vsel %vm24, %v10, 0.0
  %32 = vadd.xlane.f32.xlu0 %v31
  %v33 = vpop.xlane.xlu0 %32
  %v34 = vsel %vm24, %v11, 0.0
  %35 = vadd.xlane.f32.xlu0 %v34
  %v36 = vpop.xlane.xlu0 %35
  %v37 = vsel %vm24, %v12, 0.0
  %38 = vadd.xlane.f32.xlu0 %v37
  %v39 = vpop.xlane.xlu0 %38
  %v40 = vsel %vm24, %v13, 0.0
  %41 = vadd.xlane.f32.xlu0 %v40
  %v42 = vpop.xlane.xlu0 %41
  %v43 = vsel %vm24, %v14, 0.0
  %44 = vadd.xlane.f32.xlu0 %v43
  %v45 = vpop.xlane.xlu0 %44
  %v46 = vsel %vm24, %v15, 0.0
  %47 = vadd.xlane.f32.xlu0 %v46
  %v48 = vpop.xlane.xlu0 %47
  %v49 = vsel %vm24, %v16, 0.0
  %50 = vadd.xlane.f32.xlu0 %v49
  %v51 = vpop.xlane.xlu0 %50
  %v52 = vsel %vm24, %v17, 0.0
  %53 = vadd.xlane.f32.xlu0 %v52
  %v54 = vpop.xlane.xlu0 %53
  %v55 = vsel %vm24, %v18, 0.0
  %56 = vadd.xlane.f32.xlu0 %v55
  %v57 = vpop.xlane.xlu0 %56
  %v58 = vsel %vm24, %v19, 0.0
  %59 = vadd.xlane.f32.xlu0 %v58
  %v60 = vpop.xlane.xlu0 %59
  %v61 = vsel %vm24, %v20, 0.0
  %62 = vadd.xlane.f32.xlu0 %v61
  %v63 = vpop.xlane.xlu0 %62
  %v64 = vsel %vm24, %v21, 0.0
  %65 = vadd.xlane.f32.xlu0 %v64
  %v66 = vpop.xlane.xlu0 %65
  %v67 = vsel %vm24, %v22, 0.0
  %68 = vadd.xlane.f32.xlu0 %v67
  %v69 = vpop.xlane.xlu0 %68
  %v70 = vsel %vm24, %v23, 0.0
  %71 = vadd.xlane.f32.xlu0 %v70
  %v72 = vpop.xlane.xlu0 %71
  %v73 = vrcp.pop 64.0
  %v74 = vmul.f32 %v27, %v73
  %v75 = vmul.f32 %v30, %v73
  %v76 = vmul.f32 %v33, %v73
  %v77 = vmul.f32 %v36, %v73
  %v78 = vmul.f32 %v39, %v73
  %v79 = vmul.f32 %v42, %v73
  %v80 = vmul.f32 %v45, %v73
  %v81 = vmul.f32 %v48, %v73
  %v82 = vmul.f32 %v51, %v73
  %v83 = vmul.f32 %v54, %v73
  %v84 = vmul.f32 %v57, %v73
  %v85 = vmul.f32 %v60, %v73
  %v86 = vmul.f32 %v63, %v73
  %v87 = vmul.f32 %v66, %v73
  %v88 = vmul.f32 %v69, %v73
  %v89 = vmul.f32 %v72, %v73
  %v90 = vsub.f32 %v8, %v74
  %v91 = vsub.f32 %v9, %v75
  %v92 = vsub.f32 %v10, %v76
  %v93 = vsub.f32 %v11, %v77
  %v94 = vsub.f32 %v12, %v78
  %v95 = vsub.f32 %v13, %v79
  %v96 = vsub.f32 %v14, %v80
  %v97 = vsub.f32 %v15, %v81
  %v98 = vsub.f32 %v16, %v82
  %v99 = vsub.f32 %v17, %v83
  %v100 = vsub.f32 %v18, %v84
  %v101 = vsub.f32 %v19, %v85
  %v102 = vsub.f32 %v20, %v86
  %v103 = vsub.f32 %v21, %v87
  %v104 = vsub.f32 %v22, %v88
  %v105 = vsub.f32 %v23, %v89
  %v106 = vmul.f32 %v90, %v90
  %v107 = vmul.f32 %v91, %v91
  %v108 = vmul.f32 %v92, %v92
  %v109 = vmul.f32 %v93, %v93
  %v110 = vmul.f32 %v94, %v94
  %v111 = vmul.f32 %v95, %v95
  %v112 = vmul.f32 %v96, %v96
  %v113 = vmul.f32 %v97, %v97
  %v114 = vmul.f32 %v98, %v98
  %v115 = vmul.f32 %v99, %v99
  %v116 = vmul.f32 %v100, %v100
  %v117 = vmul.f32 %v101, %v101
  %v118 = vmul.f32 %v102, %v102
  %v119 = vmul.f32 %v103, %v103
  %v120 = vmul.f32 %v104, %v104
  %v121 = vmul.f32 %v105, %v105
  %v122 = vsel %vm24, %v106, 0.0
  %123 = vadd.xlane.f32.xlu0 %v122
  %v124 = vpop.xlane.xlu0 %123
  %v125 = vsel %vm24, %v107, 0.0
  %126 = vadd.xlane.f32.xlu0 %v125
  %v127 = vpop.xlane.xlu0 %126
  %v128 = vsel %vm24, %v108, 0.0
  %129 = vadd.xlane.f32.xlu0 %v128
  %v130 = vpop.xlane.xlu0 %129
  %v131 = vsel %vm24, %v109, 0.0
  %132 = vadd.xlane.f32.xlu0 %v131
  %v133 = vpop.xlane.xlu0 %132
  %v134 = vsel %vm24, %v110, 0.0
  %135 = vadd.xlane.f32.xlu0 %v134
  %v136 = vpop.xlane.xlu0 %135
  %v137 = vsel %vm24, %v111, 0.0
  %138 = vadd.xlane.f32.xlu0 %v137
  %v139 = vpop.xlane.xlu0 %138
  %v140 = vsel %vm24, %v112, 0.0
  %141 = vadd.xlane.f32.xlu0 %v140
  %v142 = vpop.xlane.xlu0 %141
  %v143 = vsel %vm24, %v113, 0.0
  %144 = vadd.xlane.f32.xlu0 %v143
  %v145 = vpop.xlane.xlu0 %144
  %v146 = vsel %vm24, %v114, 0.0
  %147 = vadd.xlane.f32.xlu0 %v146
  %v148 = vpop.xlane.xlu0 %147
  %v149 = vsel %vm24, %v115, 0.0
  %150 = vadd.xlane.f32.xlu0 %v149
  %v151 = vpop.xlane.xlu0 %150
  %v152 = vsel %vm24, %v116, 0.0
  %153 = vadd.xlane.f32.xlu0 %v152
  %v154 = vpop.xlane.xlu0 %153
  %v155 = vsel %vm24, %v117, 0.0
  %156 = vadd.xlane.f32.xlu0 %v155
  %v157 = vpop.xlane.xlu0 %156
  %v158 = vsel %vm24, %v118, 0.0
  %159 = vadd.xlane.f32.xlu0 %v158
  %v160 = vpop.xlane.xlu0 %159
  %v161 = vsel %vm24, %v119, 0.0
  %162 = vadd.xlane.f32.xlu0 %v161
  %v163 = vpop.xlane.xlu0 %162
  %v164 = vsel %vm24, %v120, 0.0
  %165 = vadd.xlane.f32.xlu0 %v164
  %v166 = vpop.xlane.xlu0 %165
  %v167 = vsel %vm24, %v121, 0.0
  %168 = vadd.xlane.f32.xlu0 %v167
  %v169 = vpop.xlane.xlu0 %168
  %v170 = vmul.f32 %v124, %v73
  %v171 = vmul.f32 %v127, %v73
  %v172 = vmul.f32 %v130, %v73
  %v173 = vmul.f32 %v133, %v73
  %v174 = vmul.f32 %v136, %v73
  %v175 = vmul.f32 %v139, %v73
  %v176 = vmul.f32 %v142, %v73
  %v177 = vmul.f32 %v145, %v73
  %v178 = vmul.f32 %v148, %v73
  %v179 = vmul.f32 %v151, %v73
  %v180 = vmul.f32 %v154, %v73
  %v181 = vmul.f32 %v157, %v73
  %v182 = vmul.f32 %v160, %v73
  %v183 = vmul.f32 %v163, %v73
  %v184 = vmul.f32 %v166, %v73
  %v185 = vmul.f32 %v169, %v73
  %v186 = vadd.f32 %v170, 1e-05
  %v187 = vadd.f32 %v171, 1e-05
  %v188 = vadd.f32 %v172, 1e-05
  %v189 = vadd.f32 %v173, 1e-05
  %v190 = vadd.f32 %v174, 1e-05
  %v191 = vadd.f32 %v175, 1e-05
  %v192 = vadd.f32 %v176, 1e-05
  %v193 = vadd.f32 %v177, 1e-05
  %v194 = vadd.f32 %v178, 1e-05
  %v195 = vadd.f32 %v179, 1e-05
  %v196 = vadd.f32 %v180, 1e-05
  %v197 = vadd.f32 %v181, 1e-05
  %v198 = vadd.f32 %v182, 1e-05
  %v199 = vadd.f32 %v183, 1e-05
  %v200 = vadd.f32 %v184, 1e-05
  %v201 = vadd.f32 %v185, 1e-05
  %v202 = vrsqrt.pop %v186
  %v203 = vrsqrt.pop %v187
  %v204 = vrsqrt.pop %v188
  %v205 = vrsqrt.pop %v189
  %v206 = vrsqrt.pop %v190
  %v207 = vrsqrt.pop %v191
  %v208 = vrsqrt.pop %v192
  %v209 = vrsqrt.pop %v193
  %v210 = vrsqrt.pop %v194
  %v211 = vrsqrt.pop %v195
  %v212 = vrsqrt.pop %v196
  %v213 = vrsqrt.pop %v197
  %v214 = vrsqrt.pop %v198
  %v215 = vrsqrt.pop %v199
  %v216 = vrsqrt.pop %v200
  %v217 = vrsqrt.pop %v201
  %v218 = vmul.f32 %v90, %v202
  %v219 = vmul.f32 %v91, %v203
  %v220 = vmul.f32 %v92, %v204
  %v221 = vmul.f32 %v93, %v205
  %v222 = vmul.f32 %v94, %v206
  %v223 = vmul.f32 %v95, %v207
  %v224 = vmul.f32 %v96, %v208
  %v225 = vmul.f32 %v97, %v209
  %v226 = vmul.f32 %v98, %v210
  %v227 = vmul.f32 %v99, %v211
  %v228 = vmul.f32 %v100, %v212
  %v229 = vmul.f32 %v101, %v213
  %v230 = vmul.f32 %v102, %v214
  %v231 = vmul.f32 %v103, %v215
  %v232 = vmul.f32 %v104, %v216
  %v233 = vmul.f32 %v105, %v217
  %vm234 = vcmp.gt.f32.partialorder %v218, 0.0
  %vm235 = vcmp.gt.f32.partialorder %v219, 0.0
  %vm236 = vcmp.gt.f32.partialorder %v220, 0.0
  %vm237 = vcmp.gt.f32.partialorder %v221, 0.0
  %vm238 = vcmp.gt.f32.partialorder %v222, 0.0
  %vm239 = vcmp.gt.f32.partialorder %v223, 0.0
  %vm240 = vcmp.gt.f32.partialorder %v224, 0.0
  %vm241 = vcmp.gt.f32.partialorder %v225, 0.0
  %vm242 = vcmp.gt.f32.partialorder %v226, 0.0
  %vm243 = vcmp.gt.f32.partialorder %v227, 0.0
  %vm244 = vcmp.gt.f32.partialorder %v228, 0.0
  %vm245 = vcmp.gt.f32.partialorder %v229, 0.0
  %vm246 = vcmp.gt.f32.partialorder %v230, 0.0
  %vm247 = vcmp.gt.f32.partialorder %v231, 0.0
  %vm248 = vcmp.gt.f32.partialorder %v232, 0.0
  %vm249 = vcmp.gt.f32.partialorder %v233, 0.0
  %v250 = vmul.f32 %v218, 0.2
  %v251 = vmul.f32 %v219, 0.2
  %v252 = vmul.f32 %v220, 0.2
  %v253 = vmul.f32 %v221, 0.2
  %v254 = vmul.f32 %v222, 0.2
  %v255 = vmul.f32 %v223, 0.2
  %v256 = vmul.f32 %v224, 0.2
  %v257 = vmul.f32 %v225, 0.2
  %v258 = vmul.f32 %v226, 0.2
  %v259 = vmul.f32 %v227, 0.2
  %v260 = vmul.f32 %v228, 0.2
  %v261 = vmul.f32 %v229, 0.2
  %v262 = vmul.f32 %v230, 0.2
  %v263 = vmul.f32 %v231, 0.2
  %v264 = vmul.f32 %v232, 0.2
  %v265 = vmul.f32 %v233, 0.2
  %v266 = vsel %vm234, %v218, %v250
  %v267 = vsel %vm235, %v219, %v251
  %v268 = vsel %vm236, %v220, %v252
  %v269 = vsel %vm237, %v221, %v253
  %v270 = vsel %vm238, %v222, %v254
  %v271 = vsel %vm239, %v223, %v255
  %v272 = vsel %vm240, %v224, %v256
  %v273 = vsel %vm241, %v225, %v257
  %v274 = vsel %vm242, %v226, %v258
  %v275 = vsel %vm243, %v227, %v259
  %v276 = vsel %vm244, %v228, %v260
  %v277 = vsel %vm245, %v229, %v261
  %v278 = vsel %vm246, %v230, %v262
  %v279 = vsel %vm247, %v231, %v263
  %v280 = vsel %vm248, %v232, %v264
  %v281 = vsel %vm249, %v233, %v265
  %282 = vst.msk [vmem:[%s1] sm:$0xff] %vm24, %v266
  %283 = vst.msk [vmem:[%s1 + $0x8] sm:$0xff] %vm24, %v267
  %284 = vst.msk [vmem:[%s1 + $0x10] sm:$0xff] %vm24, %v268
  %285 = vst.msk [vmem:[%s1 + $0x18] sm:$0xff] %vm24, %v269
  %286 = vst.msk [vmem:[%s1 + $0x20] sm:$0xff] %vm24, %v270
  %287 = vst.msk [vmem:[%s1 + $0x28] sm:$0xff] %vm24, %v271
  %288 = vst.msk [vmem:[%s1 + $0x30] sm:$0xff] %vm24, %v272
  %289 = vst.msk [vmem:[%s1 + $0x38] sm:$0xff] %vm24, %v273
  %290 = vst.msk [vmem:[%s1 + $0x40] sm:$0xff] %vm24, %v274
  %291 = vst.msk [vmem:[%s1 + $0x48] sm:$0xff] %vm24, %v275
  %292 = vst.msk [vmem:[%s1 + $0x50] sm:$0xff] %vm24, %v276
  %293 = vst.msk [vmem:[%s1 + $0x58] sm:$0xff] %vm24, %v277
  %294 = vst.msk [vmem:[%s1 + $0x60] sm:$0xff] %vm24, %v278
  %295 = vst.msk [vmem:[%s1 + $0x68] sm:$0xff] %vm24, %v279
  %296 = vst.msk [vmem:[%s1 + $0x70] sm:$0xff] %vm24, %v280
  %297 = vst.msk [vmem:[%s1 + $0x78] sm:$0xff] %vm24, %v281
  // Predicated region
  $region6: #{unet_down_forward.3} parent=0 // pred_check
    _
  $region7: #{unet_down_forward.3} parent=0 // pred_check_branch
    %299 = sbr.rel (0) target = $region9
  $region8: #{unet_down_forward.3} parent=0 // pred_region
    _
  $region9: #{unet_down_forward.3} parent=0 // pred_fallthru
    _
  // Predicated region
  $region10: #{unet_down_forward.3} parent=0 // pred_check
    _
  $region11: #{unet_down_forward.3} parent=0 // pred_check_branch
    %301 = sbr.rel (0) target = $region13
  $region12: #{unet_down_forward.3} parent=0 // pred_region
    _
  $region13: #{unet_down_forward.3} parent=0 // pred_fallthru
    _

// kernel: unet_down_forward.2
$region0: #{unet_down_forward.2}
  #allocation0 [shape = 'u32[]', space=smem, size = 0x4, offset = 0x4, fixed_abs, tag = 'smem constant byte address 0x4 - core index']
  #allocation1 [shape = 'u32[144,128]{1,0:T(1,128)}', space=vmem, size = 0x12000, scoped, tag = 'internal scratch']
  #allocation2 [shape = 'f32[128,64]{1,0:T(8,128)}', space=vmem, size = 0x10000, scoped, tag = 'scratch operand']
  %s0 = inlined_call_operand.vmem [shape: bf16[128,64], index: 0, kind: input, shape index: {}]
  %s1 = inlined_call_operand.vmem [shape: bf16[64,64], index: 1, kind: input, shape index: {}]
  %s2 = inlined_call_operand.vmem [shape: f32[128,64], index: 2, kind: output, shape index: {}]
  %s3 = sld [smem:[#allocation0]]
  $region26: #{unet_down_forward.2} parent=0
    _
  %s5 = ssub.s32 1, %s3
  %s6 = scalar_select 0, %s5, %s3
  // Predicated region
  $region2: #{unet_down_forward.2} parent=0 // pred_check
    _
  $region3: #{unet_down_forward.2} parent=0 // pred_check_branch
    %8 = sbr.rel (0) target = $region5
  $region4: #{unet_down_forward.2} parent=0 // pred_region
    _
  $region5: #{unet_down_forward.2} parent=0 // pred_fallthru
    _
  // Predicated region
  $region6: #{unet_down_forward.2} parent=0 // pred_check
    _
  $region7: #{unet_down_forward.2} parent=0 // pred_check_branch
    %10 = sbr.rel (0) target = $region9
  $region8: #{unet_down_forward.2} parent=0 // pred_region
    _
  $region9: #{unet_down_forward.2} parent=0 // pred_fallthru
    _
  %p12 = scmp.eq.s32.totalorder 0, 0
  // Predicated region
  $region10: #{unet_down_forward.2} parent=0 // pred_check
    %p13 = pneg %p12
  $region11: #{unet_down_forward.2} parent=0 // pred_check_branch
    %15 = sbr.rel (%p13) target = $region13
  $region12: #{unet_down_forward.2} parent=0 // pred_region
    %vm16 = vcmask 523264
    %17 = vst.msk [vmem:[#allocation2] sm:$0xff] %vm16, 0.0
    %18 = vst.msk [vmem:[#allocation2 + $0x8] sm:$0xff] %vm16, 0.0
    %19 = vst.msk [vmem:[#allocation2 + $0x10] sm:$0xff] %vm16, 0.0
    %20 = vst.msk [vmem:[#allocation2 + $0x18] sm:$0xff] %vm16, 0.0
    %21 = vst.msk [vmem:[#allocation2 + $0x20] sm:$0xff] %vm16, 0.0
    %22 = vst.msk [vmem:[#allocation2 + $0x28] sm:$0xff] %vm16, 0.0
    %23 = vst.msk [vmem:[#allocation2 + $0x30] sm:$0xff] %vm16, 0.0
    %24 = vst.msk [vmem:[#allocation2 + $0x38] sm:$0xff] %vm16, 0.0
    %25 = vst.msk [vmem:[#allocation2 + $0x40] sm:$0xff] %vm16, 0.0
    %26 = vst.msk [vmem:[#allocation2 + $0x48] sm:$0xff] %vm16, 0.0
    %27 = vst.msk [vmem:[#allocation2 + $0x50] sm:$0xff] %vm16, 0.0
    %28 = vst.msk [vmem:[#allocation2 + $0x58] sm:$0xff] %vm16, 0.0
    %29 = vst.msk [vmem:[#allocation2 + $0x60] sm:$0xff] %vm16, 0.0
    %30 = vst.msk [vmem:[#allocation2 + $0x68] sm:$0xff] %vm16, 0.0
    %31 = vst.msk [vmem:[#allocation2 + $0x70] sm:$0xff] %vm16, 0.0
    %32 = vst.msk [vmem:[#allocation2 + $0x78] sm:$0xff] %vm16, 0.0
  $region13: #{unet_down_forward.2} parent=0 // pred_fallthru
    _
  %v33 = vld [vmem:[#allocation2] sm:$0xff]
  %v34 = vld [vmem:[#allocation2 + $0x8] sm:$0xff]
  %v35 = vld [vmem:[#allocation2 + $0x10] sm:$0xff]
  %v36 = vld [vmem:[#allocation2 + $0x18] sm:$0xff]
  %v37 = vld [vmem:[#allocation2 + $0x20] sm:$0xff]
  %v38 = vld [vmem:[#allocation2 + $0x28] sm:$0xff]
  %v39 = vld [vmem:[#allocation2 + $0x30] sm:$0xff]
  %v40 = vld [vmem:[#allocation2 + $0x38] sm:$0xff]
  %v41 = vld [vmem:[#allocation2 + $0x40] sm:$0xff]
  %v42 = vld [vmem:[#allocation2 + $0x48] sm:$0xff]
  %v43 = vld [vmem:[#allocation2 + $0x50] sm:$0xff]
  %v44 = vld [vmem:[#allocation2 + $0x58] sm:$0xff]
  %v45 = vld [vmem:[#allocation2 + $0x60] sm:$0xff]
  %v46 = vld [vmem:[#allocation2 + $0x68] sm:$0xff]
  %v47 = vld [vmem:[#allocation2 + $0x70] sm:$0xff]
  %v48 = vld [vmem:[#allocation2 + $0x78] sm:$0xff]
  %v49 = vld [vmem:[%s0] sm:$0xf]
  %v50 = vld [vmem:[%s0 + $0x4] sm:$0xf]
  %v51 = vld [vmem:[%s0 + $0x8] sm:$0xf]
  %v52 = vld [vmem:[%s0 + $0xc] sm:$0xf]
  %v53 = vld [vmem:[%s0 + $0x10] sm:$0xf]
  %v54 = vld [vmem:[%s0 + $0x14] sm:$0xf]
  %v55 = vld [vmem:[%s0 + $0x18] sm:$0xf]
  %v56 = vld [vmem:[%s0 + $0x1c] sm:$0xf]
  %v57 = vld [vmem:[%s0 + $0x20] sm:$0xf]
  %v58 = vld [vmem:[%s0 + $0x24] sm:$0xf]
  %v59 = vld [vmem:[%s0 + $0x28] sm:$0xf]
  %v60 = vld [vmem:[%s0 + $0x2c] sm:$0xf]
  %v61 = vld [vmem:[%s0 + $0x30] sm:$0xf]
  %v62 = vld [vmem:[%s0 + $0x34] sm:$0xf]
  %v63 = vld [vmem:[%s0 + $0x38] sm:$0xf]
  %v64 = vld [vmem:[%s0 + $0x3c] sm:$0xf]
  %v65 = vld [vmem:[%s1] sm:$0xf]
  %v66 = vld [vmem:[%s1 + $0x4] sm:$0xf]
  %v67 = vld [vmem:[%s1 + $0x8] sm:$0xf]
  %v68 = vld [vmem:[%s1 + $0xc] sm:$0xf]
  %v69 = vld [vmem:[%s1 + $0x10] sm:$0xf]
  %v70 = vld [vmem:[%s1 + $0x14] sm:$0xf]
  %v71 = vld [vmem:[%s1 + $0x18] sm:$0xf]
  %v72 = vld [vmem:[%s1 + $0x1c] sm:$0xf]
  %v89 = vunpack.c.l.b16 %v49
  %v90 = vunpack.c.l.b16 %v50
  %v91 = vunpack.c.l.b16 %v51
  %v92 = vunpack.c.l.b16 %v52
  %v93 = vunpack.c.l.b16 %v53
  %v94 = vunpack.c.l.b16 %v54
  %v95 = vunpack.c.l.b16 %v55
  %v96 = vunpack.c.l.b16 %v56
  %v97 = vunpack.c.l.b16 %v57
  %v98 = vunpack.c.l.b16 %v58
  %v99 = vunpack.c.l.b16 %v59
  %v100 = vunpack.c.l.b16 %v60
  %v101 = vunpack.c.l.b16 %v61
  %v102 = vunpack.c.l.b16 %v62
  %v103 = vunpack.c.l.b16 %v63
  %v104 = vunpack.c.l.b16 %v64
  %v105 = vpack.c.b16 %v90, %v89
  %v106 = vpack.c.b16 %v92, %v91
  %v107 = vpack.c.b16 %v94, %v93
  %v108 = vpack.c.b16 %v96, %v95
  %v109 = vpack.c.b16 %v98, %v97
  %v110 = vpack.c.b16 %v100, %v99
  %v111 = vpack.c.b16 %v102, %v101
  %v112 = vpack.c.b16 %v104, %v103
  %v121 = vunpack.c.l.b16 %v65
  %v122 = vunpack.c.l.b16 %v66
  %v123 = vunpack.c.l.b16 %v67
  %v124 = vunpack.c.l.b16 %v68
  %v125 = vunpack.c.l.b16 %v69
  %v126 = vunpack.c.l.b16 %v70
  %v127 = vunpack.c.l.b16 %v71
  %v128 = vunpack.c.l.b16 %v72
  %v129 = vpack.c.b16 %v122, %v121
  %v130 = vpack.c.b16 %v124, %v123
  %v131 = vpack.c.b16 %v126, %v125
  %v132 = vpack.c.b16 %v128, %v127
  %vm137 = vcmask 523264
  %v139 = vsel %vm137, %v105, 0
  %v142 = vsel %vm137, %v106, 0
  %v145 = vsel %vm137, %v107, 0
  %v148 = vsel %vm137, %v108, 0
  %v151 = vsel %vm137, %v109, 0
  %v154 = vsel %vm137, %v110, 0
  %v157 = vsel %vm137, %v111, 0
  %v160 = vsel %vm137, %v112, 0
  %162 = vmatprep.subr.bf16.mxu0 0
  %163 = vmatpush1.bf16.msra.mxu0 %v129
  %164 = vmatprep.subr.bf16.mxu0 0
  %165 = vmatpush1.bf16.msra.mxu0 %v130
  %166 = vmatprep.subr.bf16.mxu0 0
  %167 = vmatpush1.bf16.msra.mxu0 %v131
  %168 = vmatprep.subr.bf16.mxu0 0
  %169 = vmatpush1.bf16.msra.mxu0 %v132
  %170 = vmatprep.subr.bf16.mxu0 0
  %171 = vmatpush1.bf16.msra.mxu0 0
  %172 = vmatprep.subr.bf16.mxu0 0
  %173 = vmatpush1.bf16.msra.mxu0 0
  %174 = vmatprep.subr.bf16.mxu0 0
  %175 = vmatpush1.bf16.msra.mxu0 0
  %176 = vmatprep.subr.bf16.mxu0 0
  %177 = vmatpush1.bf16.msra.mxu0 0
  %178 = vmatprep.subr.bf16.mxu0 0
  %179 = vmatpush1.bf16.msra.mxu0 0
  %180 = vmatprep.subr.bf16.mxu0 0
  %181 = vmatpush1.bf16.msra.mxu0 0
  %182 = vmatprep.subr.bf16.mxu0 0
  %183 = vmatpush1.bf16.msra.mxu0 0
  %184 = vmatprep.subr.bf16.mxu0 0
  %185 = vmatpush1.bf16.msra.mxu0 0
  %186 = vmatprep.subr.bf16.mxu0 0
  %187 = vmatpush1.bf16.msra.mxu0 0
  %188 = vmatprep.subr.bf16.mxu0 0
  %189 = vmatpush1.bf16.msra.mxu0 0
  %190 = vmatprep.subr.bf16.mxu0 0
  %191 = vmatpush1.bf16.msra.mxu0 0
  %192 = vmatprep.subr.bf16.mxu0 0
  %193 = vmatpush1.bf16.msra.mxu0 0
  %194 = vmatprep.mubr.bf16.mxu0 0
  %195 = vmatmul.mubr.bf16.gmra.mrb[0].mxu0 %v139
  %v196 = vpop.f32.mrb[0].mxu0
  %v197 = vadd.f32 0.0, %v196
  %v198 = vpop.f32.mrb[0].mxu0
  %v199 = vpop.f32.mrb[0].mxu0
  %v200 = vadd.f32 0.0, %v199
  %v201 = vpop.f32.mrb[0].mxu0
  %202 = vmatprep.mubr.bf16.mxu0 0
  %203 = vmatmul.mubr.bf16.gmra.mrb[0].mxu0 %v142
  %v204 = vpop.f32.mrb[0].mxu0
  %v205 = vadd.f32 0.0, %v204
  %v206 = vpop.f32.mrb[0].mxu0
  %v207 = vpop.f32.mrb[0].mxu0
  %v208 = vadd.f32 0.0, %v207
  %v209 = vpop.f32.mrb[0].mxu0
  %210 = vmatprep.mubr.bf16.mxu0 0
  %211 = vmatmul.mubr.bf16.gmra.mrb[0].mxu0 %v145
  %v212 = vpop.f32.mrb[0].mxu0
  %v213 = vadd.f32 0.0, %v212
  %v214 = vpop.f32.mrb[0].mxu0
  %v215 = vpop.f32.mrb[0].mxu0
  %v216 = vadd.f32 0.0, %v215
  %v217 = vpop.f32.mrb[0].mxu0
  %218 = vmatprep.mubr.bf16.mxu0 0
  %219 = vmatmul.mubr.bf16.gmra.mrb[0].mxu0 %v148
  %v220 = vpop.f32.mrb[0].mxu0
  %v221 = vadd.f32 0.0, %v220
  %v222 = vpop.f32.mrb[0].mxu0
  %v223 = vpop.f32.mrb[0].mxu0
  %v224 = vadd.f32 0.0, %v223
  %v225 = vpop.f32.mrb[0].mxu0
  %226 = vmatprep.mubr.bf16.mxu0 0
  %227 = vmatmul.mubr.bf16.gmra.mrb[0].mxu0 %v151
  %v228 = vpop.f32.mrb[0].mxu0
  %v229 = vadd.f32 0.0, %v228
  %v230 = vpop.f32.mrb[0].mxu0
  %v231 = vpop.f32.mrb[0].mxu0
  %v232 = vadd.f32 0.0, %v231
  %v233 = vpop.f32.mrb[0].mxu0
  %234 = vmatprep.mubr.bf16.mxu0 0
  %235 = vmatmul.mubr.bf16.gmra.mrb[0].mxu0 %v154
  %v236 = vpop.f32.mrb[0].mxu0
  %v237 = vadd.f32 0.0, %v236
  %v238 = vpop.f32.mrb[0].mxu0
  %v239 = vpop.f32.mrb[0].mxu0
  %v240 = vadd.f32 0.0, %v239
  %v241 = vpop.f32.mrb[0].mxu0
  %242 = vmatprep.mubr.bf16.mxu0 0
  %243 = vmatmul.mubr.bf16.gmra.mrb[0].mxu0 %v157
  %v244 = vpop.f32.mrb[0].mxu0
  %v245 = vadd.f32 0.0, %v244
  %v246 = vpop.f32.mrb[0].mxu0
  %v247 = vpop.f32.mrb[0].mxu0
  %v248 = vadd.f32 0.0, %v247
  %v249 = vpop.f32.mrb[0].mxu0
  %250 = vmatprep.mubr.bf16.mxu0 0
  %251 = vmatmul.mubr.bf16.gmra.mrb[0].mxu0 %v160
  %v252 = vpop.f32.mrb[0].mxu0
  %v253 = vadd.f32 0.0, %v252
  %v254 = vpop.f32.mrb[0].mxu0
  %v255 = vpop.f32.mrb[0].mxu0
  %v256 = vadd.f32 0.0, %v255
  %v257 = vpop.f32.mrb[0].mxu0
  %258 = vdwg.mxu0
  %v259 = vadd.f32 %v33, %v197
  %v260 = vadd.f32 %v34, %v200
  %v261 = vadd.f32 %v35, %v205
  %v262 = vadd.f32 %v36, %v208
  %v263 = vadd.f32 %v37, %v213
  %v264 = vadd.f32 %v38, %v216
  %v265 = vadd.f32 %v39, %v221
  %v266 = vadd.f32 %v40, %v224
  %v267 = vadd.f32 %v41, %v229
  %v268 = vadd.f32 %v42, %v232
  %v269 = vadd.f32 %v43, %v237
  %v270 = vadd.f32 %v44, %v240
  %v271 = vadd.f32 %v45, %v245
  %v272 = vadd.f32 %v46, %v248
  %v273 = vadd.f32 %v47, %v253
  %v274 = vadd.f32 %v48, %v256
  %275 = vst.msk [vmem:[#allocation2] sm:$0xff] %vm137, %v259
  %276 = vst.msk [vmem:[#allocation2 + $0x8] sm:$0xff] %vm137, %v260
  %277 = vst.msk [vmem:[#allocation2 + $0x10] sm:$0xff] %vm137, %v261
  %278 = vst.msk [vmem:[#allocation2 + $0x18] sm:$0xff] %vm137, %v262
  %279 = vst.msk [vmem:[#allocation2 + $0x20] sm:$0xff] %vm137, %v263
  %280 = vst.msk [vmem:[#allocation2 + $0x28] sm:$0xff] %vm137, %v264
  %281 = vst.msk [vmem:[#allocation2 + $0x30] sm:$0xff] %vm137, %v265
  %282 = vst.msk [vmem:[#allocation2 + $0x38] sm:$0xff] %vm137, %v266
  %283 = vst.msk [vmem:[#allocation2 + $0x40] sm:$0xff] %vm137, %v267
  %284 = vst.msk [vmem:[#allocation2 + $0x48] sm:$0xff] %vm137, %v268
  %285 = vst.msk [vmem:[#allocation2 + $0x50] sm:$0xff] %vm137, %v269
  %286 = vst.msk [vmem:[#allocation2 + $0x58] sm:$0xff] %vm137, %v270
  %287 = vst.msk [vmem:[#allocation2 + $0x60] sm:$0xff] %vm137, %v271
  %288 = vst.msk [vmem:[#allocation2 + $0x68] sm:$0xff] %vm137, %v272
  %289 = vst.msk [vmem:[#allocation2 + $0x70] sm:$0xff] %vm137, %v273
  %290 = vst.msk [vmem:[#allocation2 + $0x78] sm:$0xff] %vm137, %v274
  // Predicated region
  $region14: #{unet_down_forward.2} parent=0 // pred_check
    %p291 = pneg %p12
  $region15: #{unet_down_forward.2} parent=0 // pred_check_branch
    %293 = sbr.rel (%p291) target = $region17
  $region16: #{unet_down_forward.2} parent=0 // pred_region
    %v294 = vld [vmem:[#allocation2] sm:$0xff]
    %v295 = vld [vmem:[#allocation2 + $0x8] sm:$0xff]
    %v296 = vld [vmem:[#allocation2 + $0x10] sm:$0xff]
    %v297 = vld [vmem:[#allocation2 + $0x18] sm:$0xff]
    %v298 = vld [vmem:[#allocation2 + $0x20] sm:$0xff]
    %v299 = vld [vmem:[#allocation2 + $0x28] sm:$0xff]
    %v300 = vld [vmem:[#allocation2 + $0x30] sm:$0xff]
    %v301 = vld [vmem:[#allocation2 + $0x38] sm:$0xff]
    %v302 = vld [vmem:[#allocation2 + $0x40] sm:$0xff]
    %v303 = vld [vmem:[#allocation2 + $0x48] sm:$0xff]
    %v304 = vld [vmem:[#allocation2 + $0x50] sm:$0xff]
    %v305 = vld [vmem:[#allocation2 + $0x58] sm:$0xff]
    %v306 = vld [vmem:[#allocation2 + $0x60] sm:$0xff]
    %v307 = vld [vmem:[#allocation2 + $0x68] sm:$0xff]
    %v308 = vld [vmem:[#allocation2 + $0x70] sm:$0xff]
    %v309 = vld [vmem:[#allocation2 + $0x78] sm:$0xff]
    %310 = vst.msk [vmem:[%s2] sm:$0xff] %vm137, %v294
    %311 = vst.msk [vmem:[%s2 + $0x8] sm:$0xff] %vm137, %v295
    %312 = vst.msk [vmem:[%s2 + $0x10] sm:$0xff] %vm137, %v296
    %313 = vst.msk [vmem:[%s2 + $0x18] sm:$0xff] %vm137, %v297
    %314 = vst.msk [vmem:[%s2 + $0x20] sm:$0xff] %vm137, %v298
    %315 = vst.msk [vmem:[%s2 + $0x28] sm:$0xff] %vm137, %v299
    %316 = vst.msk [vmem:[%s2 + $0x30] sm:$0xff] %vm137, %v300
    %317 = vst.msk [vmem:[%s2 + $0x38] sm:$0xff] %vm137, %v301
    %318 = vst.msk [vmem:[%s2 + $0x40] sm:$0xff] %vm137, %v302
    %319 = vst.msk [vmem:[%s2 + $0x48] sm:$0xff] %vm137, %v303
    %320 = vst.msk [vmem:[%s2 + $0x50] sm:$0xff] %vm137, %v304
    %321 = vst.msk [vmem:[%s2 + $0x58] sm:$0xff] %vm137, %v305
    %322 = vst.msk [vmem:[%s2 + $0x60] sm:$0xff] %vm137, %v306
    %323 = vst.msk [vmem:[%s2 + $0x68] sm:$0xff] %vm137, %v307
    %324 = vst.msk [vmem:[%s2 + $0x70] sm:$0xff] %vm137, %v308
    %325 = vst.msk [vmem:[%s2 + $0x78] sm:$0xff] %vm137, %v309
  $region17: #{unet_down_forward.2} parent=0 // pred_fallthru
    _
  // Predicated region
  $region18: #{unet_down_forward.2} parent=0 // pred_check
    _
  $region19: #{unet_down_forward.2} parent=0 // pred_check_branch
    %327 = sbr.rel (0) target = $region21
  $region20: #{unet_down_forward.2} parent=0 // pred_region
    _
  $region21: #{unet_down_forward.2} parent=0 // pred_fallthru
    _
  // Predicated region
  $region22: #{unet_down_forward.2} parent=0 // pred_check
    _
  $region23: #{unet_down_forward.2} parent=0 // pred_check_branch
    %329 = sbr.rel (0) target = $region25
  $region24: #{unet_down_forward.2} parent=0 // pred_region
    _
  $region25: #{unet_down_forward.2} parent=0 // pred_fallthru
    _

</llo_original>
